<compile_context>
chip_gen: v5e
topology: v5e:2x2
jax: 0.10.0
libtpu: 0.0.40
codegen_flags: <defaults>
</compile_context>

<pallas_src>
import functools

import jax
import jax.numpy as jnp
from jax import lax
from jax.experimental import pallas as pl
from jax.experimental.pallas import tpu as pltpu


def _round_up(x, m):
    return ((x + m - 1) // m) * m


@functools.lru_cache(maxsize=1)
def _tpu_kind():
    try:
        return jax.devices()[0].device_kind.lower()
    except Exception:  # pragma: no cover - defensive; fall back to generic tiling
        return ""


def linear_kernel(x_ref, wt_ref, b_ref, o_ref):
    # x_ref: (TB, K); wt_ref: (K, N) (pre-transposed, native MXU orientation);
    # b_ref: (1, N).  y = x @ W.T + b with f32 accumulation on the MXU.
    x = x_ref[...]
    wt = wt_ref[...]
    if x.dtype != wt.dtype:
        # In-VMEM cast (VPU) — no extra HBM pass, unlike a wrapper-side astype.
        x = x.astype(wt.dtype)
    acc = lax.dot_general(
        x,
        wt,
        dimension_numbers=(((1,), (0,)), ((), ())),
        preferred_element_type=jnp.float32,
    )
    o_ref[...] = (acc + b_ref[...].astype(jnp.float32)).astype(o_ref.dtype)


@functools.partial(jax.jit, static_argnames=("block_batch", "compute_in_bf16"))
def linear_forward(x, weight, bias, *, block_batch=None, compute_in_bf16=False):
    """PyTorch nn.Linear forward: y = x @ W.T + b.

    x: (B, 100); weight: (10, 100) (native PyTorch layout); bias: (10,).

    compute_in_bf16=True casts only the tiny weight in the wrapper and casts
    the x tile in-VMEM inside the kernel (so it never adds an HBM pass).  To
    get the ~2x HBM-read-bandwidth win, supply x already in bf16.
    """
    B, K = x.shape
    N, K2 = weight.shape
    assert K == K2, (K, K2)
    out_dtype = x.dtype

    kind = _tpu_kind()
    is_v5e = ("v5 lite" in kind) or ("v5e" in kind) or ("v5litepod" in kind)
    is_v7x = ("v7" in kind) or ("7x" in kind)

    if compute_in_bf16:
        weight = weight.astype(jnp.bfloat16)  # 4 KB — free, one-time

    # One-time 4 KB transpose in the wrapper: (N, K) -> (K, N).
    wt = weight.T

    bf16_stream = compute_in_bf16 or x.dtype == jnp.bfloat16
    gran = 16 if bf16_stream else 8  # bf16 packs 2 rows/sublane -> (16,128) min tile

    # Batch tile: as big as the per-generation scoped-VMEM budget allows.
    # Lane padding (K=100->128, N=10->128) costs ~2 KiB/row double-buffered:
    #   v5e (16 MiB scoped default): TB=4096 -> ~8 MiB;  v6e/v7x (32 MiB): TB=8192 -> ~16 MiB.
    tb_max = 4096 if is_v5e else 8192
    TB = tb_max if block_batch is None else min(int(block_batch), tb_max)
    if is_v7x:
        # Keep >= ~4 grid steps so the ("parallel",) axis can feed both TCs.
        TB = min(TB, max(512, _round_up(pl.cdiv(B, 4), 512)))
    TB = min(TB, _round_up(B, gran))  # never bigger than the (padded) batch
    TB = max(gran, _round_up(TB, gran))
    grid = (pl.cdiv(B, TB),)

    b2 = bias.reshape(1, N)

    cost = pl.CostEstimate(
        flops=2 * B * K * N,
        transcendentals=0,
        bytes_accessed=(B * K * x.dtype.itemsize
                        + K * N * wt.dtype.itemsize
                        + N * bias.dtype.itemsize
                        + B * N * jnp.dtype(out_dtype).itemsize),
    )

    # With a small v7x tile, go 3-deep on the x stream so the DMA queue stays
    # ahead of very fast HBM; negligible VMEM cost at that tile size.
    x_spec_kwargs = {}
    if is_v7x and TB <= 4096 and grid[0] > 2:
        x_spec_kwargs["pipeline_mode"] = pl.Buffered(3)
    x_spec = pl.BlockSpec((TB, K), lambda i: (i, 0), **x_spec_kwargs)

    return pl.pallas_call(
        linear_kernel,
        out_shape=jax.ShapeDtypeStruct((B, N), out_dtype),
        grid_spec=pltpu.PrefetchScalarGridSpec(
            num_scalar_prefetch=0,
            grid=grid,
            in_specs=[
                x_spec,                                   # x tile, pipelined over batch
                pl.BlockSpec((K, N), lambda i: (0, 0)),   # weight (K,N), grid-invariant
                pl.BlockSpec((1, N), lambda i: (0, 0)),   # bias, grid-invariant
            ],
            out_specs=pl.BlockSpec((TB, N), lambda i: (i, 0)),
        ),
        compiler_params=pltpu.CompilerParams(
            dimension_semantics=("parallel",),  # megacore-shardable on v7x
        ),
        cost_estimate=cost,
    )(x, wt, b2)


if __name__ == "__main__":
    key = jax.random.PRNGKey(0)
    kx, kw, kb, kx2 = jax.random.split(key, 4)

    B, IN, OUT = 8, 100, 10

    # Deterministic synthetic parameters (PyTorch Linear shapes: W=(10,100), b=(10,)).
    bound = 1.0 / jnp.sqrt(jnp.float32(IN))
    weight = jax.random.uniform(kw, (OUT, IN), jnp.float32, -bound, bound)
    bias = jax.random.uniform(kb, (OUT,), jnp.float32, -bound, bound)

    # Small-batch check (single tile).
    x = jax.random.normal(kx, (B, IN), jnp.float32)
    out = jax.block_until_ready(linear_forward(x, weight, bias))
    ref = x @ weight.T + bias
    assert out.shape == (B, OUT)
    assert jnp.allclose(out, ref, atol=1e-5, rtol=1e-5)

    # Multi-tile + partial-last-tile check (exercises masked writeback).
    B2 = 300
    x2 = jax.random.normal(kx2, (B2, IN), jnp.float32)
    out2 = jax.block_until_ready(linear_forward(x2, weight, bias, block_batch=128))
    ref2 = x2 @ weight.T + bias
    assert out2.shape == (B2, OUT)
    assert jnp.allclose(out2, ref2, atol=1e-5, rtol=1e-5)

    print("KERNEL_OK")
</pallas_src>

<mosaic_0001>
module attributes {stable_mosaic.version = 11 : i64} {
  func.func @linear_kernel(%arg0: i32, %arg1: memref<8x100xf32, #tpu.memory_space<vmem>>, %arg2: memref<100x10xf32, #tpu.memory_space<vmem>>, %arg3: memref<1x10xf32, #tpu.memory_space<vmem>>, %arg4: memref<8x10xf32, #tpu.memory_space<vmem>>) attributes {dimension_semantics = [#tpu.dimension_semantics<parallel>], iteration_bounds = array<i64: 1>, scalar_prefetch = 0 : i64, scratch_operands = 0 : i64, tpu.core_type = #tpu.core_type<tc>, window_params = [{transform_indices = @transform_0, window_bounds = array<i64: 8, 100>}, {pipeline_mode = #tpu.pipeline_mode<synchronous>, transform_indices = @transform_1, window_bounds = array<i64: 100, 10>}, {pipeline_mode = #tpu.pipeline_mode<synchronous>, transform_indices = @transform_2, window_bounds = array<i64: 1, 10>}, {transform_indices = @transform_3, window_bounds = array<i64: 8, 10>}]} {
    %c0 = arith.constant 0 : index
    %c0_0 = arith.constant 0 : index
    %0 = vector.load %arg1[%c0, %c0_0] : memref<8x100xf32, #tpu.memory_space<vmem>>, vector<8x100xf32>
    %c0_1 = arith.constant 0 : index
    %c0_2 = arith.constant 0 : index
    %1 = vector.load %arg2[%c0_1, %c0_2] : memref<100x10xf32, #tpu.memory_space<vmem>>, vector<100x10xf32>
    %cst = arith.constant dense<0.000000e+00> : vector<8x10xf32>
    %2 = tpu.matmul %0, %1, %cst {dimension_numbers = #tpu.dot_dimension_numbers<[1], [0], [0], [1], [0, 0, 1, 1], [], []>} : vector<8x100xf32>, vector<100x10xf32>, vector<8x10xf32> -> vector<8x10xf32>
    %c0_3 = arith.constant 0 : index
    %c0_4 = arith.constant 0 : index
    %3 = vector.load %arg3[%c0_3, %c0_4] : memref<1x10xf32, #tpu.memory_space<vmem>>, vector<1x10xf32>
    %4 = vector.broadcast %3 : vector<1x10xf32> to vector<8x10xf32>
    %5 = arith.addf %2, %4 : vector<8x10xf32>
    %c0_5 = arith.constant 0 : index
    %c0_6 = arith.constant 0 : index
    %6 = vector.load %arg4[%c0_5, %c0_6] : memref<8x10xf32, #tpu.memory_space<vmem>>, vector<8x10xf32>
    tpu.vector_store %arg4[%c0_5, %c0_6], %5 {strides = array<i32>} : memref<8x10xf32, #tpu.memory_space<vmem>>, vector<8x10xf32>,
    return
  }
  func.func @transform_0(%arg0: i32) -> (i32, i32) {
    %c0_i32 = arith.constant 0 : i32
    %c0_i32_0 = arith.constant 0 : i32
    return %arg0, %c0_i32 : i32, i32
  }
  func.func @transform_1(%arg0: i32) -> (i32, i32) {
    %c0_i32 = arith.constant 0 : i32
    %c0_i32_0 = arith.constant 0 : i32
    %c0_i32_1 = arith.constant 0 : i32
    return %c0_i32, %c0_i32_0 : i32, i32
  }
  func.func @transform_2(%arg0: i32) -> (i32, i32) {
    %c0_i32 = arith.constant 0 : i32
    %c0_i32_0 = arith.constant 0 : i32
    %c0_i32_1 = arith.constant 0 : i32
    return %c0_i32, %c0_i32_0 : i32, i32
  }
  func.func @transform_3(%arg0: i32) -> (i32, i32) {
    %c0_i32 = arith.constant 0 : i32
    %c0_i32_0 = arith.constant 0 : i32
    return %arg0, %c0_i32 : i32, i32
  }
}

</mosaic_0001>

<llo_original>
// kernel: linear_forward.1
$region0: #{linear_forward.1}
  #allocation0 [shape = 'u32[]', space=smem, size = 0x4, offset = 0x4, fixed_abs, tag = 'smem constant byte address 0x4 - core index']
  #allocation1 [shape = 'u32[72,128]{1,0:T(1,128)}', space=vmem, size = 0x9000, scoped, tag = 'internal scratch']
  %s0 = inlined_call_operand.vmem [shape: f32[8,100], index: 0, kind: input, shape index: {}]
  %s1 = inlined_call_operand.vmem [shape: f32[100,10], index: 1, kind: input, shape index: {}]
  %s2 = inlined_call_operand.vmem [shape: f32[1,10], index: 2, kind: input, shape index: {}]
  %s3 = inlined_call_operand.hbm [shape: f32[8,10], index: 3, kind: output, shape index: {}]
  %s4 = sld [smem:[#allocation0]]
  $region22: #{linear_forward.1} parent=0
    _
  %s6 = ssub.s32 1, %s4
  %s7 = scalar_select 0, %s6, %s4
  $region1: #{linear_forward.1} parent=0
    #allocation2 [shape = 'u8[4096]{0}', space=vmem, size = 0x1000, scoped, tag = 'output window, operand 0, single buffered']
    #allocation3 [shape = 's32[1]{0}', space=sflag, size = 0x4, scoped, tag = 'scoped memory for linear_forward.1']
    %8 = vsyncpa [#allocation3], 0
    // Predicated region
    $region2: #{linear_forward.1} parent=1 // pred_check
      _
    $region3: #{linear_forward.1} parent=1 // pred_check_branch
      %10 = sbr.rel (0) target = $region5
    $region4: #{linear_forward.1} parent=1 // pred_region
      _
    $region5: #{linear_forward.1} parent=1 // pred_fallthru
      _
    // Predicated region
    $region6: #{linear_forward.1} parent=1 // pred_check
      _
    $region7: #{linear_forward.1} parent=1 // pred_check_branch
      %12 = sbr.rel (0) target = $region9
    $region8: #{linear_forward.1} parent=1 // pred_region
      _
    $region9: #{linear_forward.1} parent=1 // pred_fallthru
      _
    // Predicated region
    $region10: #{linear_forward.1} parent=1 // pred_check
      _
    $region11: #{linear_forward.1} parent=1 // pred_check_branch
      %14 = sbr.rel (0) target = $region13
    $region12: #{linear_forward.1} parent=1 // pred_region
      _
    $region13: #{linear_forward.1} parent=1 // pred_fallthru
      _
    %v15 = vld [vmem:[%s0] sm:$0xff]
    %v16 = vld [vmem:[%s1] sm:$0xff]
    %v17 = vld [vmem:[%s1 + $0x8] sm:$0xff]
    %v18 = vld [vmem:[%s1 + $0x10] sm:$0xff]
    %v19 = vld [vmem:[%s1 + $0x18] sm:$0xff]
    %v20 = vld [vmem:[%s1 + $0x20] sm:$0xff]
    %v21 = vld [vmem:[%s1 + $0x28] sm:$0xff]
    %v22 = vld [vmem:[%s1 + $0x30] sm:$0xff]
    %v23 = vld [vmem:[%s1 + $0x38] sm:$0xff]
    %v24 = vld [vmem:[%s1 + $0x40] sm:$0xff]
    %v25 = vld [vmem:[%s1 + $0x48] sm:$0xff]
    %v26 = vld [vmem:[%s1 + $0x50] sm:$0xff]
    %v27 = vld [vmem:[%s1 + $0x58] sm:$0xff]
    %v28 = vld [vmem:[%s1 + $0x60] sm:$0xf]
    %v29 = vld [vmem:[%s2] sm:$0x1]
    %v31 = vperm.slane %v29, 0
    %vm33 = vcmask 818176
    %v35 = vsel %vm33, %v15, 0
    %vm37 = vcmask 1043456
    %v39 = vsel %vm37, %v28, 0
    %41 = vmatpush.msra.mxu0 0.0
    %42 = vmatpush.msra.mxu0 0.0
    %43 = vmatpush.msra.mxu0 0.0
    %44 = vmatpush.msra.mxu0 %v39
    %45 = vmatpush.msra.mxu0 %v27
    %46 = vmatpush.msra.mxu0 %v26
    %47 = vmatpush.msra.mxu0 %v25
    %48 = vmatpush.msra.mxu0 %v24
    %49 = vmatpush.msra.mxu0 %v23
    %50 = vmatpush.msra.mxu0 %v22
    %51 = vmatpush.msra.mxu0 %v21
    %52 = vmatpush.msra.mxu0 %v20
    %53 = vmatpush.msra.mxu0 %v19
    %54 = vmatpush.msra.mxu0 %v18
    %55 = vmatpush.msra.mxu0 %v17
    %56 = vmatpush.msra.mxu0 %v16
    %57 = vmatmul.f32.gmra.mxu0 %v35
    %v58 = vpop.f32.mrf.mxu0
    %v59 = vadd.f32 %v31, %v58
    %60 = vdwg.mxu0
    %vm61 = vcmask 80896
    %62 = vst.msk [vmem:[#allocation2] sm:$0xff] %vm61, %v59
    // Predicated region
    $region14: #{linear_forward.1} parent=1 // pred_check
      _
    $region15: #{linear_forward.1} parent=1 // pred_check_branch
      %64 = sbr.rel (0) target = $region17
    $region16: #{linear_forward.1} parent=1 // pred_region
      %66 = vsyncadd [#allocation3], 0
      %s68 = sshll.u32 [#allocation2], 4
      %s69 = int_to_ptr.vmem [resolvable:$true] %s68
      %s70 = sshll.u32 %s3, 4
      %s71 = int_to_ptr.hbm [resolvable:$true] %s70
      %73 = dma.vmem_to_hbm [thread:$0]  %s69, 128, %s71, [#allocation3]
    $region17: #{linear_forward.1} parent=1 // pred_fallthru
      _
    // Predicated region
    $region18: #{linear_forward.1} parent=1 // pred_check
      _
    $region19: #{linear_forward.1} parent=1 // pred_check_branch
      %75 = sbr.rel (0) target = $region21
    $region20: #{linear_forward.1} parent=1 // pred_region
      %77 = dma.done [#allocation3], 128
    $region21: #{linear_forward.1} parent=1 // pred_fallthru
      _
    %78 = vsyncpa [#allocation3], 1

</llo_original>
